<compile_context>
chip_gen: v7x
topology: tpu7x:2x2x1
jax: 0.10.0
libtpu: 0.0.40
codegen_flags: <defaults>
</compile_context>

<pallas_src>
import functools

import jax
import jax.numpy as jnp
from jax.experimental import pallas as pl
from jax.experimental.pallas import tpu as pltpu


def _round_up(n, m):
    return ((n + m - 1) // m) * m


def _choose_row_tile(batch):
    """Row-tile size: large tiles (HBM roofline), >=2 grid steps whenever possible
    (v7x megacore), and never a 2x padding blowup on awkward batch sizes."""
    max_tb = 1024
    n_tiles = max(2, pl.cdiv(batch, max_tb))
    return max(8, _round_up(pl.cdiv(batch, n_tiles), 8))


def _softmax_probs(logits):
    m = jnp.max(logits, axis=-1, keepdims=True)
    e = jnp.exp(logits - m)
    s = jnp.sum(e, axis=-1, keepdims=True)
    return e * pl.reciprocal(s, approx=True)


def _softmax_probs_logprobs(logits):
    m = jnp.max(logits, axis=-1, keepdims=True)
    z = logits - m
    e = jnp.exp(z)
    s = jnp.sum(e, axis=-1, keepdims=True)
    probs = e * pl.reciprocal(s, approx=True)
    log_probs = z - jnp.log(s)
    return probs, log_probs


def _pianet_kernel(num_policies, num_actions, h1, h2,
                   x_ref, wfe_ref, wbody_ref, wout_ref, bias_ref,
                   out_ref, tail_ref):
    P, A = num_policies, num_actions
    f32, bf16 = jnp.float32, jnp.bfloat16
    h2x2 = 2 * h2
    outc = P * A + A + 1

    b_all = bias_ref[...]
    b_fe = b_all[0:1, :h1]
    b_body = b_all[1:2, :h2x2]
    b_out = b_all[2:3, :outc]

    # feature_extractor: Linear + ReLU (bf16 matmul, f32 accumulate/elementwise)
    x = x_ref[...].astype(bf16)
    phi = jnp.maximum(
        jnp.dot(x, wfe_ref[...], preferred_element_type=f32) + b_fe, 0.0)

    # policy_inference_body | actor_critic_body fused: one (H1, 2*H2) matmul.
    # lanes [0, H2) = pi_emb, lanes [H2, 2*H2) = ac_emb.
    body = jnp.maximum(
        jnp.dot(phi.astype(bf16), wbody_ref[...], preferred_element_type=f32) + b_body, 0.0)

    # combined = [pi_emb | pi_emb * ac_emb]  (roll swaps halves on the XLU; select on VPU)
    rolled = pltpu.roll(body, shift=h2, axis=1)
    lane = jax.lax.broadcasted_iota(jnp.int32, body.shape, 1)
    combined = jnp.where(lane < h2, body, body * rolled).astype(bf16)

    # Single block-structured output matmul:
    #   columns [0, P*A)        : P policy-inference head logits (from pi_emb rows)
    #   columns [P*A, P*A+A)    : actor logits                    (from pi_emb*ac_emb rows)
    #   column  P*A+A           : V                               (from pi_emb*ac_emb rows)
    fused = jnp.dot(combined, wout_ref[...], preferred_element_type=f32) + b_out

    # Per-head softmax (static unroll over tiny 8-wide segments; VPU/EUP only),
    # stored directly into the bf16 output slab (no concatenate / pad materialization).
    for s in range(P):
        probs = _softmax_probs(fused[:, s * A:(s + 1) * A])
        out_ref[:, s * A:(s + 1) * A] = probs.astype(bf16)

    probs, log_probs = _softmax_probs_logprobs(fused[:, P * A:P * A + A])
    out_ref[:, P * A:P * A + A] = probs.astype(bf16)
    out_ref[:, P * A + A:P * A + 2 * A] = log_probs.astype(bf16)

    ent = -jnp.sum(probs * log_probs, axis=-1, keepdims=True)
    v = fused[:, P * A + A:P * A + A + 1]
    tail_ref[:, 0:1] = ent          # f32 tail: [entropy | V]
    tail_ref[:, 1:2] = v


def _pack_params(params, num_policies, num_actions):
    """One-time weight fusion / bf16 cast (tiny arrays, pure XLA)."""
    bf16 = jnp.bfloat16
    P, A = num_policies, num_actions
    h1 = params['w_fe'].shape[1]
    h2 = params['w_pib'].shape[1]
    outc = P * A + A + 1

    w_fe = params['w_fe'].astype(bf16)                                              # (S, H1)
    w_body = jnp.concatenate([params['w_pib'], params['w_acb']], axis=1).astype(bf16)  # (H1, 2H2)

    # (P, H2, A) -> (H2, P*A); head p occupies columns [p*A, (p+1)*A)
    w_heads = jnp.transpose(params['w_heads'], (1, 0, 2)).reshape(h2, P * A)
    w_ac = jnp.concatenate([params['w_act'], params['w_crit']], axis=1)             # (H2, A+1)
    # Combined kernel input is [pi_emb | pi_emb*ac_emb] -> block-structured weight:
    #   rows [0, H2)    : policy-head columns, zeros elsewhere
    #   rows [H2, 2*H2) : fc_action|fc_critic columns, zeros elsewhere
    w_out = jnp.concatenate([
        jnp.concatenate([w_heads, jnp.zeros((h2, A + 1), jnp.float32)], axis=1),
        jnp.concatenate([jnp.zeros((h2, P * A), jnp.float32), w_ac], axis=1),
    ], axis=0).astype(bf16)                                                         # (2H2, outc)

    b_heads = jnp.transpose(params['b_heads'], (1, 0, 2)).reshape(1, P * A)
    b_out = jnp.concatenate([b_heads, params['b_act'], params['b_crit']], axis=1)   # (1, outc)
    b_body = jnp.concatenate([params['b_pib'], params['b_acb']], axis=1)            # (1, 2H2)
    b_fe = params['b_fe']                                                           # (1, H1)

    bw = max(h1, 2 * h2, outc)
    pad = lambda b: jnp.pad(b, ((0, 0), (0, bw - b.shape[1])))
    biases = jnp.concatenate([pad(b_fe), pad(b_body), pad(b_out)], axis=0)          # (3, bw) f32
    return w_fe, w_body, w_out, biases


def policy_inference_actor_critic_forward(x, params, num_policies, num_actions, sample_key):
    B, state_dim = x.shape
    P, A = num_policies, num_actions
    h1 = params['w_fe'].shape[1]
    h2 = params['w_pib'].shape[1]

    w_fe, w_body, w_out, biases = _pack_params(params, P, A)

    TB = _choose_row_tile(B)
    grid = (pl.cdiv(B, TB),)                      # ragged final block; no jnp.pad pass over x
    OUT_W = _round_up(P * A + 2 * A, 128)         # lane-dense bf16 slab width

    slab, tail = pl.pallas_call(
        functools.partial(_pianet_kernel, P, A, h1, h2),
        out_shape=(jax.ShapeDtypeStruct((B, OUT_W), jnp.bfloat16),   # probs / log_probs slab
                   jax.ShapeDtypeStruct((B, 2), jnp.float32)),       # [entropy | V] f32 tail
        grid=grid,
        in_specs=[
            pl.BlockSpec((TB, state_dim), lambda i: (i, 0)),
            pl.BlockSpec(w_fe.shape, lambda i: (0, 0)),      # weights stay VMEM-resident
            pl.BlockSpec(w_body.shape, lambda i: (0, 0)),
            pl.BlockSpec(w_out.shape, lambda i: (0, 0)),
            pl.BlockSpec(biases.shape, lambda i: (0, 0)),
        ],
        out_specs=(pl.BlockSpec((TB, OUT_W), lambda i: (i, 0)),
                   pl.BlockSpec((TB, 2), lambda i: (i, 0))),
        compiler_params=pltpu.CompilerParams(dimension_semantics=("parallel",)),
    )(x, w_fe, w_body, w_out, biases)

    pi_probs = [slab[:, p * A:(p + 1) * A].astype(jnp.float32) for p in range(P)]
    ac_probs = slab[:, P * A:P * A + A].astype(jnp.float32)
    ac_logp = slab[:, P * A + A:P * A + 2 * A].astype(jnp.float32)
    entropy = tail[:, 0:1]
    v = tail[:, 1:2]

    # Glue (not a hot path): categorical sampling + per-row log-prob gather, matching
    # torch's dist.sample().view(-1, 1) and the diag-gather of log_prob.
    # TODO(synk): sampling could be folded into the kernel via pltpu.prng_* (Gumbel-max).
    action = jax.random.categorical(sample_key, ac_logp, axis=-1).reshape(-1, 1)
    log_pi_a = jnp.take_along_axis(ac_logp, action, axis=-1)

    prediction = {f'policy_{i}': pi_probs[i] for i in range(P)}
    prediction.update({'a': action,
                       'log_pi_a': log_pi_a,
                       'entropy': entropy,
                       'V': v,
                       'probs': ac_probs})
    return prediction


def init_params(key, state_dim, h1, h2, num_actions, num_policies):
    """Deterministic synthetic init. fc_action / fc_critic get gain 0.001 (layer_init),
    all biases are zero, mirroring the module's layer_init convention."""
    ks = jax.random.split(key, 7)

    def lin(k, fan_in, fan_out, gain=1.0):
        w = gain * jax.random.normal(k, (fan_in, fan_out), jnp.float32) / jnp.sqrt(fan_in)
        b = jnp.zeros((1, fan_out), jnp.float32)
        return w, b

    w_fe, b_fe = lin(ks[0], state_dim, h1)
    w_pib, b_pib = lin(ks[1], h1, h2)
    w_acb, b_acb = lin(ks[2], h1, h2)

    head_keys = jax.random.split(ks[3], num_policies)
    w_heads = jnp.stack(
        [jax.random.normal(hk, (h2, num_actions), jnp.float32) / jnp.sqrt(h2)
         for hk in head_keys], axis=0)                                  # (P, H2, A)
    b_heads = jnp.zeros((num_policies, 1, num_actions), jnp.float32)    # (P, 1, A)

    w_act, b_act = lin(ks[4], h2, num_actions, gain=0.001)
    w_crit, b_crit = lin(ks[5], h2, 1, gain=0.001)

    return dict(w_fe=w_fe, b_fe=b_fe,
                w_pib=w_pib, b_pib=b_pib,
                w_acb=w_acb, b_acb=b_acb,
                w_heads=w_heads, b_heads=b_heads,
                w_act=w_act, b_act=b_act,
                w_crit=w_crit, b_crit=b_crit)


def reference_forward(x, params, num_policies, num_actions):
    """Pure-JAX reference with the same bf16-input / f32-accumulate matmul precision."""
    bf16, f32 = jnp.bfloat16, jnp.float32

    def dot(a, w):
        return jnp.dot(a.astype(bf16), w.astype(bf16), preferred_element_type=f32)

    phi = jax.nn.relu(dot(x, params['w_fe']) + params['b_fe'])
    pi_emb = jax.nn.relu(dot(phi, params['w_pib']) + params['b_pib'])
    ac_emb = jax.nn.relu(dot(phi, params['w_acb']) + params['b_acb'])
    pi_probs = [jax.nn.softmax(dot(pi_emb, params['w_heads'][p]) + params['b_heads'][p], axis=-1)
                for p in range(num_policies)]
    head_in = pi_emb * ac_emb
    logits = dot(head_in, params['w_act']) + params['b_act']
    v = dot(head_in, params['w_crit']) + params['b_crit']
    logp = jax.nn.log_softmax(logits, axis=-1)
    probs = jnp.exp(logp)
    ent = -jnp.sum(probs * logp, axis=-1, keepdims=True)
    return pi_probs, probs, logp, ent, v


if __name__ == "__main__":
    B, STATE_DIM, H1, H2 = 4, 32, 64, 64
    NUM_POLICIES, NUM_ACTIONS = 3, 8

    root = jax.random.PRNGKey(0)
    k_x, k_p, k_sample, k_x2 = jax.random.split(root, 4)

    x = jax.random.normal(k_x, (B, STATE_DIM), jnp.float32)
    params = init_params(k_p, STATE_DIM, H1, H2, NUM_ACTIONS, NUM_POLICIES)

    out = policy_inference_actor_critic_forward(x, params, NUM_POLICIES, NUM_ACTIONS, k_sample)
    out = jax.block_until_ready(out)

    # ---- shape / probability-simplex sanity checks ----
    assert out['probs'].shape == (B, NUM_ACTIONS)
    assert out['V'].shape == (B, 1)
    assert out['a'].shape == (B, 1)
    assert out['log_pi_a'].shape == (B, 1)
    assert out['entropy'].shape == (B, 1)
    for i in range(NUM_POLICIES):
        assert out[f'policy_{i}'].shape == (B, NUM_ACTIONS)
        assert jnp.allclose(out[f'policy_{i}'].sum(-1), 1.0, atol=1e-2)
    assert jnp.allclose(out['probs'].sum(-1), 1.0, atol=1e-2)

    # ---- numerical check against a same-precision pure-JAX reference ----
    ref_pi, ref_probs, ref_logp, ref_ent, ref_v = reference_forward(
        x, params, NUM_POLICIES, NUM_ACTIONS)
    for i in range(NUM_POLICIES):
        assert jnp.allclose(out[f'policy_{i}'], ref_pi[i], atol=5e-3, rtol=5e-3)
    assert jnp.allclose(out['probs'], ref_probs, atol=5e-3, rtol=5e-3)
    assert jnp.allclose(out['entropy'], ref_ent, atol=5e-3, rtol=5e-3)
    assert jnp.allclose(out['V'], ref_v, atol=1e-3, rtol=1e-3)

    # ---- multi-tile / ragged-batch path (grid > 1, non-divisible final block) ----
    B2 = 20
    x2 = jax.random.normal(k_x2, (B2, STATE_DIM), jnp.float32)
    out2 = jax.block_until_ready(
        policy_inference_actor_critic_forward(x2, params, NUM_POLICIES, NUM_ACTIONS, k_sample))
    ref2 = reference_forward(x2, params, NUM_POLICIES, NUM_ACTIONS)
    assert out2['probs'].shape == (B2, NUM_ACTIONS)
    assert out2['V'].shape == (B2, 1)
    assert jnp.allclose(out2['probs'], ref2[1], atol=1e-2, rtol=1e-2)
    assert jnp.allclose(out2['V'], ref2[4], atol=1e-3, rtol=1e-3)

    print("KERNEL_OK")
</pallas_src>

<mosaic_0001>
module attributes {stable_mosaic.version = 11 : i64} {
  func.func @_pianet_kernel(%arg0: i32, %arg1: memref<8x32xf32, #tpu.memory_space<vmem>>, %arg2: memref<32x64xbf16, #tpu.memory_space<vmem>>, %arg3: memref<64x128xbf16, #tpu.memory_space<vmem>>, %arg4: memref<128x33xbf16, #tpu.memory_space<vmem>>, %arg5: memref<3x128xf32, #tpu.memory_space<vmem>>, %arg6: memref<8x128xbf16, #tpu.memory_space<vmem>>, %arg7: memref<8x2xf32, #tpu.memory_space<vmem>>) attributes {dimension_semantics = [#tpu.dimension_semantics<parallel>], iteration_bounds = array<i64: 1>, scalar_prefetch = 0 : i64, scratch_operands = 0 : i64, tpu.core_type = #tpu.core_type<tc>, window_params = [{transform_indices = @transform_0, window_bounds = array<i64: 8, 32>}, {pipeline_mode = #tpu.pipeline_mode<synchronous>, transform_indices = @transform_1, window_bounds = array<i64: 32, 64>}, {pipeline_mode = #tpu.pipeline_mode<synchronous>, transform_indices = @transform_2, window_bounds = array<i64: 64, 128>}, {pipeline_mode = #tpu.pipeline_mode<synchronous>, transform_indices = @transform_3, window_bounds = array<i64: 128, 33>}, {pipeline_mode = #tpu.pipeline_mode<synchronous>, transform_indices = @transform_4, window_bounds = array<i64: 3, 128>}, {transform_indices = @transform_5, window_bounds = array<i64: 8, 128>}, {transform_indices = @transform_6, window_bounds = array<i64: 8, 2>}]} {
    %c0 = arith.constant 0 : index
    %c0_0 = arith.constant 0 : index
    %0 = vector.load %arg5[%c0, %c0_0] : memref<3x128xf32, #tpu.memory_space<vmem>>, vector<3x128xf32>
    %1 = vector.extract_strided_slice %0 {offsets = [0, 0], sizes = [1, 64], strides = [1, 1]} : vector<3x128xf32> to vector<1x64xf32>
    %2 = vector.extract_strided_slice %0 {offsets = [1, 0], sizes = [1, 128], strides = [1, 1]} : vector<3x128xf32> to vector<1x128xf32>
    %3 = vector.extract_strided_slice %0 {offsets = [2, 0], sizes = [1, 33], strides = [1, 1]} : vector<3x128xf32> to vector<1x33xf32>
    %c0_1 = arith.constant 0 : index
    %c0_2 = arith.constant 0 : index
    %4 = vector.load %arg1[%c0_1, %c0_2] : memref<8x32xf32, #tpu.memory_space<vmem>>, vector<8x32xf32>
    %5 = arith.truncf %4 : vector<8x32xf32> to vector<8x32xbf16>
    %c0_3 = arith.constant 0 : index
    %c0_4 = arith.constant 0 : index
    %6 = vector.load %arg2[%c0_3, %c0_4] : memref<32x64xbf16, #tpu.memory_space<vmem>>, vector<32x64xbf16>
    %cst = arith.constant dense<0.000000e+00> : vector<8x64xf32>
    %7 = tpu.matmul %5, %6, %cst {dimension_numbers = #tpu.dot_dimension_numbers<[1], [0], [0], [1], [0, 0, 1, 1], [], []>} : vector<8x32xbf16>, vector<32x64xbf16>, vector<8x64xf32> -> vector<8x64xf32>
    %8 = vector.broadcast %1 : vector<1x64xf32> to vector<8x64xf32>
    %9 = arith.addf %7, %8 : vector<8x64xf32>
    %cst_5 = arith.constant 0.000000e+00 : f32
    %10 = vector.broadcast %cst_5 : f32 to vector<8x64xf32>
    %11 = arith.maximumf %9, %10 : vector<8x64xf32>
    %12 = arith.truncf %11 : vector<8x64xf32> to vector<8x64xbf16>
    %c0_6 = arith.constant 0 : index
    %c0_7 = arith.constant 0 : index
    %13 = vector.load %arg3[%c0_6, %c0_7] : memref<64x128xbf16, #tpu.memory_space<vmem>>, vector<64x128xbf16>
    %cst_8 = arith.constant dense<0.000000e+00> : vector<8x128xf32>
    %14 = tpu.matmul %12, %13, %cst_8 {dimension_numbers = #tpu.dot_dimension_numbers<[1], [0], [0], [1], [0, 0, 1, 1], [], []>} : vector<8x64xbf16>, vector<64x128xbf16>, vector<8x128xf32> -> vector<8x128xf32>
    %15 = vector.broadcast %2 : vector<1x128xf32> to vector<8x128xf32>
    %16 = arith.addf %14, %15 : vector<8x128xf32>
    %cst_9 = arith.constant 0.000000e+00 : f32
    %17 = vector.broadcast %cst_9 : f32 to vector<8x128xf32>
    %18 = arith.maximumf %16, %17 : vector<8x128xf32>
    %c64_i32 = arith.constant 64 : i32
    %19 = tpu.dynamic_rotate %18 by %c64_i32 dim 1 : vector<8x128xf32>, i32 -> vector<8x128xf32>
    %20 = tpu.iota {dimensions = array<i32: 1>} : vector<8x128xi32>
    %c64_i32_10 = arith.constant 64 : i32
    %21 = vector.broadcast %c64_i32_10 : i32 to vector<8x128xi32>
    %22 = arith.cmpi slt, %20, %21 : vector<8x128xi32>
    %23 = arith.mulf %18, %19 : vector<8x128xf32>
    %24 = arith.select %22, %18, %23 : vector<8x128xi1>, vector<8x128xf32>
    %25 = arith.truncf %24 : vector<8x128xf32> to vector<8x128xbf16>
    %c0_11 = arith.constant 0 : index
    %c0_12 = arith.constant 0 : index
    %26 = vector.load %arg4[%c0_11, %c0_12] : memref<128x33xbf16, #tpu.memory_space<vmem>>, vector<128x33xbf16>
    %cst_13 = arith.constant dense<0.000000e+00> : vector<8x33xf32>
    %27 = tpu.matmul %25, %26, %cst_13 {dimension_numbers = #tpu.dot_dimension_numbers<[1], [0], [0], [1], [0, 0, 1, 1], [], []>} : vector<8x128xbf16>, vector<128x33xbf16>, vector<8x33xf32> -> vector<8x33xf32>
    %28 = vector.broadcast %3 : vector<1x33xf32> to vector<8x33xf32>
    %29 = arith.addf %27, %28 : vector<8x33xf32>
    %30 = vector.extract_strided_slice %29 {offsets = [0, 0], sizes = [8, 8], strides = [1, 1]} : vector<8x33xf32> to vector<8x8xf32>
    %cst_14 = arith.constant dense<0xFF800000> : vector<8xf32>
    %31 = vector.multi_reduction <maximumf>, %30, %cst_14 [1] : vector<8x8xf32> to vector<8xf32>
    %32 = vector.shape_cast %31 : vector<8xf32> to vector<8x1xf32>
    %33 = vector.broadcast %32 : vector<8x1xf32> to vector<8x8xf32>
    %34 = arith.subf %30, %33 : vector<8x8xf32>
    %35 = math.exp %34 : vector<8x8xf32>
    %cst_15 = arith.constant dense<0.000000e+00> : vector<8xf32>
    %36 = vector.multi_reduction <add>, %35, %cst_15 [1] : vector<8x8xf32> to vector<8xf32>
    %37 = vector.shape_cast %36 : vector<8xf32> to vector<8x1xf32>
    %38 = tpu.reciprocal %37 {approx = true} : vector<8x1xf32> -> vector<8x1xf32>
    %39 = vector.broadcast %38 : vector<8x1xf32> to vector<8x8xf32>
    %40 = arith.mulf %35, %39 : vector<8x8xf32>
    %41 = arith.truncf %40 : vector<8x8xf32> to vector<8x8xbf16>
    %c0_16 = arith.constant 0 : index
    %c0_17 = arith.constant 0 : index
    %42 = vector.load %arg6[%c0_16, %c0_17] : memref<8x128xbf16, #tpu.memory_space<vmem>>, vector<8x8xbf16>
    tpu.vector_store %arg6[%c0_16, %c0_17], %41 {strides = array<i32>} : memref<8x128xbf16, #tpu.memory_space<vmem>>, vector<8x8xbf16>,
    %43 = vector.extract_strided_slice %29 {offsets = [0, 8], sizes = [8, 8], strides = [1, 1]} : vector<8x33xf32> to vector<8x8xf32>
    %cst_18 = arith.constant dense<0xFF800000> : vector<8xf32>
    %44 = vector.multi_reduction <maximumf>, %43, %cst_18 [1] : vector<8x8xf32> to vector<8xf32>
    %45 = vector.shape_cast %44 : vector<8xf32> to vector<8x1xf32>
    %46 = vector.broadcast %45 : vector<8x1xf32> to vector<8x8xf32>
    %47 = arith.subf %43, %46 : vector<8x8xf32>
    %48 = math.exp %47 : vector<8x8xf32>
    %cst_19 = arith.constant dense<0.000000e+00> : vector<8xf32>
    %49 = vector.multi_reduction <add>, %48, %cst_19 [1] : vector<8x8xf32> to vector<8xf32>
    %50 = vector.shape_cast %49 : vector<8xf32> to vector<8x1xf32>
    %51 = tpu.reciprocal %50 {approx = true} : vector<8x1xf32> -> vector<8x1xf32>
    %52 = vector.broadcast %51 : vector<8x1xf32> to vector<8x8xf32>
    %53 = arith.mulf %48, %52 : vector<8x8xf32>
    %54 = arith.truncf %53 : vector<8x8xf32> to vector<8x8xbf16>
    %c0_20 = arith.constant 0 : index
    %c8 = arith.constant 8 : index
    %55 = vector.load %arg6[%c0_20, %c8] : memref<8x128xbf16, #tpu.memory_space<vmem>>, vector<8x8xbf16>
    tpu.vector_store %arg6[%c0_20, %c8], %54 {strides = array<i32>} : memref<8x128xbf16, #tpu.memory_space<vmem>>, vector<8x8xbf16>,
    %56 = vector.extract_strided_slice %29 {offsets = [0, 16], sizes = [8, 8], strides = [1, 1]} : vector<8x33xf32> to vector<8x8xf32>
    %cst_21 = arith.constant dense<0xFF800000> : vector<8xf32>
    %57 = vector.multi_reduction <maximumf>, %56, %cst_21 [1] : vector<8x8xf32> to vector<8xf32>
    %58 = vector.shape_cast %57 : vector<8xf32> to vector<8x1xf32>
    %59 = vector.broadcast %58 : vector<8x1xf32> to vector<8x8xf32>
    %60 = arith.subf %56, %59 : vector<8x8xf32>
    %61 = math.exp %60 : vector<8x8xf32>
    %cst_22 = arith.constant dense<0.000000e+00> : vector<8xf32>
    %62 = vector.multi_reduction <add>, %61, %cst_22 [1] : vector<8x8xf32> to vector<8xf32>
    %63 = vector.shape_cast %62 : vector<8xf32> to vector<8x1xf32>
    %64 = tpu.reciprocal %63 {approx = true} : vector<8x1xf32> -> vector<8x1xf32>
    %65 = vector.broadcast %64 : vector<8x1xf32> to vector<8x8xf32>
    %66 = arith.mulf %61, %65 : vector<8x8xf32>
    %67 = arith.truncf %66 : vector<8x8xf32> to vector<8x8xbf16>
    %c0_23 = arith.constant 0 : index
    %c16 = arith.constant 16 : index
    %68 = vector.load %arg6[%c0_23, %c16] : memref<8x128xbf16, #tpu.memory_space<vmem>>, vector<8x8xbf16>
    tpu.vector_store %arg6[%c0_23, %c16], %67 {strides = array<i32>} : memref<8x128xbf16, #tpu.memory_space<vmem>>, vector<8x8xbf16>,
    %69 = vector.extract_strided_slice %29 {offsets = [0, 24], sizes = [8, 8], strides = [1, 1]} : vector<8x33xf32> to vector<8x8xf32>
    %cst_24 = arith.constant dense<0xFF800000> : vector<8xf32>
    %70 = vector.multi_reduction <maximumf>, %69, %cst_24 [1] : vector<8x8xf32> to vector<8xf32>
    %71 = vector.shape_cast %70 : vector<8xf32> to vector<8x1xf32>
    %72 = vector.broadcast %71 : vector<8x1xf32> to vector<8x8xf32>
    %73 = arith.subf %69, %72 : vector<8x8xf32>
    %74 = math.exp %73 : vector<8x8xf32>
    %cst_25 = arith.constant dense<0.000000e+00> : vector<8xf32>
    %75 = vector.multi_reduction <add>, %74, %cst_25 [1] : vector<8x8xf32> to vector<8xf32>
    %76 = vector.shape_cast %75 : vector<8xf32> to vector<8x1xf32>
    %77 = tpu.reciprocal %76 {approx = true} : vector<8x1xf32> -> vector<8x1xf32>
    %78 = vector.broadcast %77 : vector<8x1xf32> to vector<8x8xf32>
    %79 = arith.mulf %74, %78 : vector<8x8xf32>
    %80 = math.log %76 : vector<8x1xf32>
    %81 = vector.broadcast %80 : vector<8x1xf32> to vector<8x8xf32>
    %82 = arith.subf %73, %81 : vector<8x8xf32>
    %83 = arith.truncf %79 : vector<8x8xf32> to vector<8x8xbf16>
    %c0_26 = arith.constant 0 : index
    %c24 = arith.constant 24 : index
    %84 = vector.load %arg6[%c0_26, %c24] : memref<8x128xbf16, #tpu.memory_space<vmem>>, vector<8x8xbf16>
    tpu.vector_store %arg6[%c0_26, %c24], %83 {strides = array<i32>} : memref<8x128xbf16, #tpu.memory_space<vmem>>, vector<8x8xbf16>,
    %85 = arith.truncf %82 : vector<8x8xf32> to vector<8x8xbf16>
    %c0_27 = arith.constant 0 : index
    %c32 = arith.constant 32 : index
    %86 = vector.load %arg6[%c0_27, %c32] : memref<8x128xbf16, #tpu.memory_space<vmem>>, vector<8x8xbf16>
    tpu.vector_store %arg6[%c0_27, %c32], %85 {strides = array<i32>} : memref<8x128xbf16, #tpu.memory_space<vmem>>, vector<8x8xbf16>,
    %87 = arith.mulf %79, %82 : vector<8x8xf32>
    %cst_28 = arith.constant dense<0.000000e+00> : vector<8xf32>
    %88 = vector.multi_reduction <add>, %87, %cst_28 [1] : vector<8x8xf32> to vector<8xf32>
    %89 = vector.shape_cast %88 : vector<8xf32> to vector<8x1xf32>
    %cst_29 = arith.constant 0.000000e+00 : f32
    %90 = vector.broadcast %cst_29 : f32 to vector<8x1xf32>
    %91 = arith.subf %90, %89 : vector<8x1xf32>
    %92 = vector.extract_strided_slice %29 {offsets = [0, 32], sizes = [8, 1], strides = [1, 1]} : vector<8x33xf32> to vector<8x1xf32>
    %c0_30 = arith.constant 0 : index
    %c0_31 = arith.constant 0 : index
    %93 = vector.load %arg7[%c0_30, %c0_31] : memref<8x2xf32, #tpu.memory_space<vmem>>, vector<8x1xf32>
    tpu.vector_store %arg7[%c0_30, %c0_31], %91 {strides = array<i32>} : memref<8x2xf32, #tpu.memory_space<vmem>>, vector<8x1xf32>,
    %c0_32 = arith.constant 0 : index
    %c1 = arith.constant 1 : index
    %94 = vector.load %arg7[%c0_32, %c1] : memref<8x2xf32, #tpu.memory_space<vmem>>, vector<8x1xf32>
    tpu.vector_store %arg7[%c0_32, %c1], %92 {strides = array<i32>} : memref<8x2xf32, #tpu.memory_space<vmem>>, vector<8x1xf32>,
    return
  }
  func.func @transform_0(%arg0: i32) -> (i32, i32) {
    %c0_i32 = arith.constant 0 : i32
    %c0_i32_0 = arith.constant 0 : i32
    return %arg0, %c0_i32 : i32, i32
  }
  func.func @transform_1(%arg0: i32) -> (i32, i32) {
    %c0_i32 = arith.constant 0 : i32
    %c0_i32_0 = arith.constant 0 : i32
    %c0_i32_1 = arith.constant 0 : i32
    return %c0_i32, %c0_i32_0 : i32, i32
  }
  func.func @transform_2(%arg0: i32) -> (i32, i32) {
    %c0_i32 = arith.constant 0 : i32
    %c0_i32_0 = arith.constant 0 : i32
    %c0_i32_1 = arith.constant 0 : i32
    return %c0_i32, %c0_i32_0 : i32, i32
  }
  func.func @transform_3(%arg0: i32) -> (i32, i32) {
    %c0_i32 = arith.constant 0 : i32
    %c0_i32_0 = arith.constant 0 : i32
    %c0_i32_1 = arith.constant 0 : i32
    return %c0_i32, %c0_i32_0 : i32, i32
  }
  func.func @transform_4(%arg0: i32) -> (i32, i32) {
    %c0_i32 = arith.constant 0 : i32
    %c0_i32_0 = arith.constant 0 : i32
    %c0_i32_1 = arith.constant 0 : i32
    return %c0_i32, %c0_i32_0 : i32, i32
  }
  func.func @transform_5(%arg0: i32) -> (i32, i32) {
    %c0_i32 = arith.constant 0 : i32
    %c0_i32_0 = arith.constant 0 : i32
    return %arg0, %c0_i32 : i32, i32
  }
  func.func @transform_6(%arg0: i32) -> (i32, i32) {
    %c0_i32 = arith.constant 0 : i32
    %c0_i32_0 = arith.constant 0 : i32
    return %arg0, %c0_i32 : i32, i32
  }
}

</mosaic_0001>

<llo_original>
// kernel: tpu_custom_call.1
$region0: #{tpu_custom_call.1}
  #allocation0 [shape = 'u32[]', space=smem, size = 0x4, offset = 0x4, fixed_abs, tag = 'smem constant byte address 0x4 - core index']
  #allocation1 [shape = 'u32[144,128]{1,0:T(1,128)}', space=vmem, size = 0x12000, scoped, tag = 'internal scratch']
  %s0 = inlined_call_operand.vmem [shape: f32[4,32], index: 0, kind: input, shape index: {}]
  %s1 = inlined_call_operand.vmem [shape: bf16[32,64], index: 1, kind: input, shape index: {}]
  %s2 = inlined_call_operand.vmem [shape: bf16[64,128], index: 2, kind: input, shape index: {}]
  %s3 = inlined_call_operand.vmem [shape: bf16[128,33], index: 3, kind: input, shape index: {}]
  %s4 = inlined_call_operand.vmem [shape: f32[3,128], index: 4, kind: input, shape index: {}]
  %s5 = inlined_call_operand.hbm [shape: bf16[4,128], index: 5, kind: output, shape index: {0}]
  %s6 = inlined_call_operand.vmem [shape: f32[4,2], index: 6, kind: output, shape index: {1}]
  %7 = xla_tuple %s5, %s6
  %s8 = sld [smem:[#allocation0]]
  $region68: #{tpu_custom_call.1} parent=0
    _
  %s10 = ssub.s32 1, %s8
  %s11 = scalar_select 0, %s10, %s8
  $region1: #{tpu_custom_call.1} parent=0
    #allocation2 [shape = 'u8[2048]{0}', space=vmem, size = 0x800, scoped, tag = 'output window, operand 0, single buffered']
    #allocation3 [shape = 's32[1]{0}', space=sflag, size = 0x4, scoped, tag = 'scoped memory for tpu_custom_call.1']
    #allocation4 [shape = 'u8[4096]{0}', space=vmem, size = 0x1000, scoped, tag = 'output window, operand 1, single buffered']
    %12 = vsyncpa [#allocation3], 0
    // Predicated region
    $region2: #{tpu_custom_call.1} parent=1 // pred_check
      _
    $region3: #{tpu_custom_call.1} parent=1 // pred_check_branch
      %14 = sbr.rel (0) target = $region5
    $region4: #{tpu_custom_call.1} parent=1 // pred_region
      _
    $region5: #{tpu_custom_call.1} parent=1 // pred_fallthru
      _
    // Predicated region
    $region6: #{tpu_custom_call.1} parent=1 // pred_check
      _
    $region7: #{tpu_custom_call.1} parent=1 // pred_check_branch
      %16 = sbr.rel (0) target = $region9
    $region8: #{tpu_custom_call.1} parent=1 // pred_region
      _
    $region9: #{tpu_custom_call.1} parent=1 // pred_fallthru
      _
    // Predicated region
    $region10: #{tpu_custom_call.1} parent=1 // pred_check
      _
    $region11: #{tpu_custom_call.1} parent=1 // pred_check_branch
      %18 = sbr.rel (0) target = $region13
    $region12: #{tpu_custom_call.1} parent=1 // pred_region
      _
    $region13: #{tpu_custom_call.1} parent=1 // pred_fallthru
      _
    // Predicated region
    $region14: #{tpu_custom_call.1} parent=1 // pred_check
      _
    $region15: #{tpu_custom_call.1} parent=1 // pred_check_branch
      %20 = sbr.rel (0) target = $region17
    $region16: #{tpu_custom_call.1} parent=1 // pred_region
      _
    $region17: #{tpu_custom_call.1} parent=1 // pred_fallthru
      _
    // Predicated region
    $region18: #{tpu_custom_call.1} parent=1 // pred_check
      _
    $region19: #{tpu_custom_call.1} parent=1 // pred_check_branch
      %22 = sbr.rel (0) target = $region21
    $region20: #{tpu_custom_call.1} parent=1 // pred_region
      _
    $region21: #{tpu_custom_call.1} parent=1 // pred_fallthru
      _
    %v24 = vld [vmem:[%s4] sm:$0x7]
    %v25 = vld [vmem:[%s0] sm:$0xff]
    %v26 = vpack.c.bf16 %v25, %v25
    %v27 = vld [vmem:[%s1] sm:$0xf]
    %v28 = vld [vmem:[%s1 + $0x4] sm:$0xf]
    %v29 = vld [vmem:[%s1 + $0x8] sm:$0xf]
    %v30 = vld [vmem:[%s1 + $0xc] sm:$0xf]
    %v31 = vlaneseq
    %v32 = vshrl.u32 %v31, 7
    %v33 = vsub.s32 0, %v32
    %v34 = vrot.slane %v24, %v33
    %v39 = vunpack.c.l.b16 %v27
    %v40 = vunpack.c.l.b16 %v28
    %v41 = vunpack.c.l.b16 %v29
    %v42 = vunpack.c.l.b16 %v30
    %v43 = vpack.c.b16 %v40, %v39
    %v44 = vpack.c.b16 %v42, %v41
    %vm47 = vcmask 261120
    %v49 = vsel %vm47, %v26, 0
    %51 = vmatprep.subr.bf16.mxu0 0
    %52 = vmatpush1.bf16.msra.mxu0 %v43
    %53 = vmatprep.subr.bf16.mxu0 0
    %54 = vmatpush1.bf16.msra.mxu0 %v44
    %55 = vmatprep.subr.bf16.mxu0 0
    %56 = vmatpush1.bf16.msra.mxu0 0
    %57 = vmatprep.subr.bf16.mxu0 0
    %58 = vmatpush1.bf16.msra.mxu0 0
    %59 = vmatprep.subr.bf16.mxu0 0
    %60 = vmatpush1.bf16.msra.mxu0 0
    %61 = vmatprep.subr.bf16.mxu0 0
    %62 = vmatpush1.bf16.msra.mxu0 0
    %63 = vmatprep.subr.bf16.mxu0 0
    %64 = vmatpush1.bf16.msra.mxu0 0
    %65 = vmatprep.subr.bf16.mxu0 0
    %66 = vmatpush1.bf16.msra.mxu0 0
    %67 = vmatprep.subr.bf16.mxu0 0
    %68 = vmatpush1.bf16.msra.mxu0 0
    %69 = vmatprep.subr.bf16.mxu0 0
    %70 = vmatpush1.bf16.msra.mxu0 0
    %71 = vmatprep.subr.bf16.mxu0 0
    %72 = vmatpush1.bf16.msra.mxu0 0
    %73 = vmatprep.subr.bf16.mxu0 0
    %74 = vmatpush1.bf16.msra.mxu0 0
    %75 = vmatprep.subr.bf16.mxu0 0
    %76 = vmatpush1.bf16.msra.mxu0 0
    %77 = vmatprep.subr.bf16.mxu0 0
    %78 = vmatpush1.bf16.msra.mxu0 0
    %79 = vmatprep.subr.bf16.mxu0 0
    %80 = vmatpush1.bf16.msra.mxu0 0
    %81 = vmatprep.subr.bf16.mxu0 0
    %82 = vmatpush1.bf16.msra.mxu0 0
    %83 = vmatprep.mubr.bf16.mxu0 0
    %84 = vmatmul.mubr.bf16.gmra.mrb[0].mxu0 %v49
    %v85 = vpop.f32.mrb[0].mxu0
    %v86 = vadd.f32 %v34, %v85
    %v87 = vpop.f32.mrb[0].mxu0
    %v88 = vpop.f32.mrb[0].mxu0
    %v89 = vpop.f32.mrb[0].mxu0
    %90 = vdwg.mxu0
    %v91 = vmax.f32 %v86, 0.0
    %v92 = vpack.c.bf16 %v91, %v91
    %v93 = vld [vmem:[%s2] sm:$0xf]
    %v94 = vld [vmem:[%s2 + $0x4] sm:$0xf]
    %v95 = vld [vmem:[%s2 + $0x8] sm:$0xf]
    %v96 = vld [vmem:[%s2 + $0xc] sm:$0xf]
    %v97 = vld [vmem:[%s2 + $0x10] sm:$0xf]
    %v98 = vld [vmem:[%s2 + $0x14] sm:$0xf]
    %v99 = vld [vmem:[%s2 + $0x18] sm:$0xf]
    %v100 = vld [vmem:[%s2 + $0x1c] sm:$0xf]
    %v101 = vlaneseq
    %v102 = vshrl.u32 %v101, 7
    %v103 = vsub.s32 1, %v102
    %v104 = vrot.slane %v24, %v103
    %v113 = vunpack.c.l.b16 %v93
    %v114 = vunpack.c.l.b16 %v94
    %v115 = vunpack.c.l.b16 %v95
    %v116 = vunpack.c.l.b16 %v96
    %v117 = vunpack.c.l.b16 %v97
    %v118 = vunpack.c.l.b16 %v98
    %v119 = vunpack.c.l.b16 %v99
    %v120 = vunpack.c.l.b16 %v100
    %v121 = vpack.c.b16 %v114, %v113
    %v122 = vpack.c.b16 %v116, %v115
    %v123 = vpack.c.b16 %v118, %v117
    %v124 = vpack.c.b16 %v120, %v119
    %vm129 = vcmask 523264
    %v131 = vsel %vm129, %v92, 0
    %133 = vmatprep.subr.bf16.mxu0 0
    %134 = vmatpush1.bf16.msra.mxu0 %v121
    %135 = vmatprep.subr.bf16.mxu0 0
    %136 = vmatpush1.bf16.msra.mxu0 %v122
    %137 = vmatprep.subr.bf16.mxu0 0
    %138 = vmatpush1.bf16.msra.mxu0 %v123
    %139 = vmatprep.subr.bf16.mxu0 0
    %140 = vmatpush1.bf16.msra.mxu0 %v124
    %141 = vmatprep.subr.bf16.mxu0 0
    %142 = vmatpush1.bf16.msra.mxu0 0
    %143 = vmatprep.subr.bf16.mxu0 0
    %144 = vmatpush1.bf16.msra.mxu0 0
    %145 = vmatprep.subr.bf16.mxu0 0
    %146 = vmatpush1.bf16.msra.mxu0 0
    %147 = vmatprep.subr.bf16.mxu0 0
    %148 = vmatpush1.bf16.msra.mxu0 0
    %149 = vmatprep.subr.bf16.mxu0 0
    %150 = vmatpush1.bf16.msra.mxu0 0
    %151 = vmatprep.subr.bf16.mxu0 0
    %152 = vmatpush1.bf16.msra.mxu0 0
    %153 = vmatprep.subr.bf16.mxu0 0
    %154 = vmatpush1.bf16.msra.mxu0 0
    %155 = vmatprep.subr.bf16.mxu0 0
    %156 = vmatpush1.bf16.msra.mxu0 0
    %157 = vmatprep.subr.bf16.mxu0 0
    %158 = vmatpush1.bf16.msra.mxu0 0
    %159 = vmatprep.subr.bf16.mxu0 0
    %160 = vmatpush1.bf16.msra.mxu0 0
    %161 = vmatprep.subr.bf16.mxu0 0
    %162 = vmatpush1.bf16.msra.mxu0 0
    %163 = vmatprep.subr.bf16.mxu0 0
    %164 = vmatpush1.bf16.msra.mxu0 0
    %165 = vmatprep.mubr.bf16.mxu0 0
    %166 = vmatmul.mubr.bf16.gmra.mrb[0].mxu0 %v131
    %v167 = vpop.f32.mrb[0].mxu0
    %v168 = vadd.f32 %v104, %v167
    %v169 = vpop.f32.mrb[0].mxu0
    %v170 = vpop.f32.mrb[0].mxu0
    %v171 = vpop.f32.mrb[0].mxu0
    %172 = vdwg.mxu0
    %v173 = vmax.f32 %v168, 0.0
    %174 = vrot.lane.b32.xlu0 %v173, 64
    %v175 = vpop.permute.xlu0 %174
    %v176 = vlaneseq
    %v177 = vand.u32 %v176, 127
    %vm178 = vcmp.lt.s32.totalorder %v177, 64
    %v179 = vmul.f32 %v173, %v175
    %v180 = vsel %vm178, %v173, %v179
    %v181 = vpack.c.bf16 %v180, %v180
    %v182 = vld [vmem:[%s3] sm:$0xf]
    %v183 = vld [vmem:[%s3 + $0x4] sm:$0xf]
    %v184 = vld [vmem:[%s3 + $0x8] sm:$0xf]
    %v185 = vld [vmem:[%s3 + $0xc] sm:$0xf]
    %v186 = vld [vmem:[%s3 + $0x10] sm:$0xf]
    %v187 = vld [vmem:[%s3 + $0x14] sm:$0xf]
    %v188 = vld [vmem:[%s3 + $0x18] sm:$0xf]
    %v189 = vld [vmem:[%s3 + $0x1c] sm:$0xf]
    %v190 = vld [vmem:[%s3 + $0x20] sm:$0xf]
    %v191 = vld [vmem:[%s3 + $0x24] sm:$0xf]
    %v192 = vld [vmem:[%s3 + $0x28] sm:$0xf]
    %v193 = vld [vmem:[%s3 + $0x2c] sm:$0xf]
    %v194 = vld [vmem:[%s3 + $0x30] sm:$0xf]
    %v195 = vld [vmem:[%s3 + $0x34] sm:$0xf]
    %v196 = vld [vmem:[%s3 + $0x38] sm:$0xf]
    %v197 = vld [vmem:[%s3 + $0x3c] sm:$0xf]
    %v198 = vlaneseq
    %v199 = vshrl.u32 %v198, 7
    %v200 = vsub.s32 2, %v199
    %v201 = vrot.slane %v24, %v200
    %v218 = vunpack.c.l.b16 %v182
    %v219 = vunpack.c.l.b16 %v183
    %v220 = vunpack.c.l.b16 %v184
    %v221 = vunpack.c.l.b16 %v185
    %v222 = vunpack.c.l.b16 %v186
    %v223 = vunpack.c.l.b16 %v187
    %v224 = vunpack.c.l.b16 %v188
    %v225 = vunpack.c.l.b16 %v189
    %v226 = vunpack.c.l.b16 %v190
    %v227 = vunpack.c.l.b16 %v191
    %v228 = vunpack.c.l.b16 %v192
    %v229 = vunpack.c.l.b16 %v193
    %v230 = vunpack.c.l.b16 %v194
    %v231 = vunpack.c.l.b16 %v195
    %v232 = vunpack.c.l.b16 %v196
    %v233 = vunpack.c.l.b16 %v197
    %v234 = vpack.c.b16 %v219, %v218
    %v235 = vpack.c.b16 %v221, %v220
    %v236 = vpack.c.b16 %v223, %v222
    %v237 = vpack.c.b16 %v225, %v224
    %v238 = vpack.c.b16 %v227, %v226
    %v239 = vpack.c.b16 %v229, %v228
    %v240 = vpack.c.b16 %v231, %v230
    %v241 = vpack.c.b16 %v233, %v232
    %250 = vmatprep.subr.bf16.mxu0 0
    %251 = vmatpush1.bf16.msra.mxu0 %v234
    %252 = vmatprep.subr.bf16.mxu0 0
    %253 = vmatpush1.bf16.msra.mxu0 %v235
    %254 = vmatprep.subr.bf16.mxu0 0
    %255 = vmatpush1.bf16.msra.mxu0 %v236
    %256 = vmatprep.subr.bf16.mxu0 0
    %257 = vmatpush1.bf16.msra.mxu0 %v237
    %258 = vmatprep.subr.bf16.mxu0 0
    %259 = vmatpush1.bf16.msra.mxu0 %v238
    %260 = vmatprep.subr.bf16.mxu0 0
    %261 = vmatpush1.bf16.msra.mxu0 %v239
    %262 = vmatprep.subr.bf16.mxu0 0
    %263 = vmatpush1.bf16.msra.mxu0 %v240
    %264 = vmatprep.subr.bf16.mxu0 0
    %265 = vmatpush1.bf16.msra.mxu0 %v241
    %266 = vmatprep.subr.bf16.mxu0 0
    %267 = vmatpush1.bf16.msra.mxu0 0
    %268 = vmatprep.subr.bf16.mxu0 0
    %269 = vmatpush1.bf16.msra.mxu0 0
    %270 = vmatprep.subr.bf16.mxu0 0
    %271 = vmatpush1.bf16.msra.mxu0 0
    %272 = vmatprep.subr.bf16.mxu0 0
    %273 = vmatpush1.bf16.msra.mxu0 0
    %274 = vmatprep.subr.bf16.mxu0 0
    %275 = vmatpush1.bf16.msra.mxu0 0
    %276 = vmatprep.subr.bf16.mxu0 0
    %277 = vmatpush1.bf16.msra.mxu0 0
    %278 = vmatprep.subr.bf16.mxu0 0
    %279 = vmatpush1.bf16.msra.mxu0 0
    %280 = vmatprep.subr.bf16.mxu0 0
    %281 = vmatpush1.bf16.msra.mxu0 0
    %282 = vmatprep.mubr.bf16.mxu0 0
    %283 = vmatmul.mubr.bf16.gmra.mrb[0].mxu0 %v181
    %v284 = vpop.f32.mrb[0].mxu0
    %v285 = vadd.f32 %v201, %v284
    %v286 = vpop.f32.mrb[0].mxu0
    %v287 = vpop.f32.mrb[0].mxu0
    %v288 = vpop.f32.mrb[0].mxu0
    %289 = vdwg.mxu0
    %vm290 = vcmask 64512
    %v291 = vsel %vm290, %v285, -inf
    %292 = vmax.xlane.f32.xlu0 %v291
    %v293 = vpop.xlane.xlu0 %292
    %v294 = vsub.f32 %v285, %v293
    %v295 = vmul.f32 %v294, 1.442695
    %v296 = vpow.pop %v295
    %v297 = vsel %vm290, %v296, 0.0
    %298 = vadd.xlane.f32.xlu0 %v297
    %v299 = vpop.xlane.xlu0 %298
    %v300 = vrcp.pop %v299
    %v301 = vmul.f32 %v296, %v300
    %v302 = vpack.c.bf16 %v301, %v301
    %v305 = vunpack.c.l.s4 1983009808
    %v306 = vunpack.c.0.s8 %v305
    %v307 = vlaneseq
    %v308 = vshrl.u32 %v307, 7
    %v309 = vsub.s32 %v306, %v308
    %v310 = vrot.slane %v302, %v309
    %v311 = vcombine.high %v310, %v310
    %vm314 = vcmask 58368
    %315 = vst.msk [vmem:[#allocation2] sm:$0x3] %vm314, %v310
    %316 = vst.msk [vmem:[#allocation2 + $0x2] sm:$0x3] %vm314, %v311
    %vm317 = vcmask 130112
    %v318 = vsel %vm317, %v285, -inf
    %319 = vmax.xlane.f32.xlu0 %v318
    %v320 = vpop.xlane.xlu0 %319
    %v321 = vsub.f32 %v285, %v320
    %v322 = vmul.f32 %v321, 1.442695
    %v323 = vpow.pop %v322
    %325 = vrot.lane.b32.xlu0 %v323, 120
    %v326 = vpop.permute.xlu0 %325
    %v328 = vsel %vm290, %v326, 0.0
    %329 = vadd.xlane.f32.xlu0 %v328
    %v330 = vpop.xlane.xlu0 %329
    %v331 = vrcp.pop %v330
    %v332 = vmul.f32 %v323, %v331
    %v333 = vpack.c.bf16 %v332, %v332
    %v336 = vunpack.c.l.s4 1983009808
    %v337 = vunpack.c.0.s8 %v336
    %v338 = vlaneseq
    %v339 = vshrl.u32 %v338, 7
    %v340 = vsub.s32 %v337, %v339
    %v341 = vrot.slane %v333, %v340
    %v342 = vcombine.high %v341, %v341
    %vm345 = vcmask 123968
    %346 = vst.msk [vmem:[#allocation2] sm:$0x3] %vm345, %v341
    %347 = vst.msk [vmem:[#allocation2 + $0x2] sm:$0x3] %vm345, %v342
    %vm348 = vcmask 195712
    %v349 = vsel %vm348, %v285, -inf
    %350 = vmax.xlane.f32.xlu0 %v349
    %v351 = vpop.xlane.xlu0 %350
    %v352 = vsub.f32 %v285, %v351
    %v353 = vmul.f32 %v352, 1.442695
    %v354 = vpow.pop %v353
    %356 = vrot.lane.b32.xlu0 %v354, 112
    %v357 = vpop.permute.xlu0 %356
    %v359 = vsel %vm290, %v357, 0.0
    %360 = vadd.xlane.f32.xlu0 %v359
    %v361 = vpop.xlane.xlu0 %360
    %v362 = vrcp.pop %v361
    %v363 = vmul.f32 %v354, %v362
    %v364 = vpack.c.bf16 %v363, %v363
    %v367 = vunpack.c.l.s4 1983009808
    %v368 = vunpack.c.0.s8 %v367
    %v369 = vlaneseq
    %v370 = vshrl.u32 %v369, 7
    %v371 = vsub.s32 %v368, %v370
    %v372 = vrot.slane %v364, %v371
    %v373 = vcombine.high %v372, %v372
    %vm376 = vcmask 189568
    %377 = vst.msk [vmem:[#allocation2] sm:$0x3] %vm376, %v372
    %378 = vst.msk [vmem:[#allocation2 + $0x2] sm:$0x3] %vm376, %v373
    %vm379 = vcmask 261312
    %v380 = vsel %vm379, %v285, -inf
    %381 = vmax.xlane.f32.xlu0 %v380
    %v382 = vpop.xlane.xlu0 %381
    %v383 = vsub.f32 %v285, %v382
    %v384 = vmul.f32 %v383, 1.442695
    %v385 = vpow.pop %v384
    %387 = vrot.lane.b32.xlu0 %v385, 104
    %v388 = vpop.permute.xlu0 %387
    %v390 = vsel %vm290, %v388, 0.0
    %391 = vadd.xlane.f32.xlu0 %v390
    %v392 = vpop.xlane.xlu0 %391
    %v393 = vrcp.pop %v392
    %v394 = vmul.f32 %v385, %v393
    %v395 = vlog2.pop %v392
    %v396 = vmul.f32 %v395, 0.6931472
    %v397 = vsub.f32 %v383, %v396
    %v398 = vpack.c.bf16 %v394, %v394
    %v401 = vunpack.c.l.s4 1983009808
    %v402 = vunpack.c.0.s8 %v401
    %v403 = vlaneseq
    %v404 = vshrl.u32 %v403, 7
    %v405 = vsub.s32 %v402, %v404
    %v406 = vrot.slane %v398, %v405
    %v407 = vcombine.high %v406, %v406
    %vm410 = vcmask 255168
    %411 = vst.msk [vmem:[#allocation2] sm:$0x3] %vm410, %v406
    %412 = vst.msk [vmem:[#allocation2 + $0x2] sm:$0x3] %vm410, %v407
    %v413 = vpack.c.bf16 %v397, %v397
    %v416 = vunpack.c.l.s4 1983009808
    %v417 = vunpack.c.0.s8 %v416
    %v418 = vlaneseq
    %v419 = vshrl.u32 %v418, 7
    %v420 = vsub.s32 %v417, %v419
    %v421 = vrot.slane %v413, %v420
    %v422 = vcombine.high %v421, %v421
    %423 = vrot.lane.b32.xlu0 %v421, 8
    %v424 = vpop.permute.xlu0 %423
    %425 = vrot.lane.b32.xlu0 %v422, 8
    %v426 = vpop.permute.xlu0 %425
    %vm429 = vcmask 320768
    %430 = vst.msk [vmem:[#allocation2] sm:$0x3] %vm429, %v424
    %431 = vst.msk [vmem:[#allocation2 + $0x2] sm:$0x3] %vm429, %v426
    %v432 = vmul.f32 %v394, %v397
    %434 = vrot.lane.b32.xlu0 %v432, 104
    %v435 = vpop.permute.xlu0 %434
    %v437 = vsel %vm290, %v435, 0.0
    %438 = vadd.xlane.f32.xlu0 %v437
    %v439 = vpop.xlane.xlu0 %438
    %v440 = vsub.f32 0.0, %v439
    %vm441 = vcmask 7168
    %442 = vst.msk [vmem:[#allocation4] sm:$0xff] %vm441, %v440
    %444 = vrot.lane.b32.xlu0 %v285, 97
    %v445 = vpop.permute.xlu0 %444
    %vm447 = vcmask 15368
    %448 = vst.msk [vmem:[#allocation4] sm:$0xff] %vm447, %v445
    // Predicated region
    $region22: #{tpu_custom_call.1} parent=1 // pred_check
      _
    $region23: #{tpu_custom_call.1} parent=1 // pred_check_branch
      %450 = sbr.rel (0) target = $region25
    $region24: #{tpu_custom_call.1} parent=1 // pred_region
      %s452 = ssub.s32 64, 32
      %453 = vsyncadd [#allocation3], %s452
      %s454 = sshll.u32 [#allocation2], 4
      %s455 = int_to_ptr.vmem [resolvable:$true] %s454
      %460 = dma.vmem_to_hbm [thread:$0]  %s455, 32, %s5, [#allocation3], 32, 32, 2
    $region25: #{tpu_custom_call.1} parent=1 // pred_fallthru
      _
    // Predicated region
    $region26: #{tpu_custom_call.1} parent=1 // pred_check
      _
    $region27: #{tpu_custom_call.1} parent=1 // pred_check_branch
      %462 = sbr.rel (0) target = $region29
    $region28: #{tpu_custom_call.1} parent=1 // pred_region
      // Predicated region
      $region30: #{tpu_custom_call.1} parent=28 // pred_check
        _
      $region31: #{tpu_custom_call.1} parent=28 // pred_check_branch
        %464 = sbr.rel (0) target = $region33
      $region32: #{tpu_custom_call.1} parent=28 // pred_region
        // Predicated region
        $region34: #{tpu_custom_call.1} parent=32 // pred_check
          _
        $region35: #{tpu_custom_call.1} parent=32 // pred_check_branch
          %466 = sbr.rel target = $region37
        $region36: #{tpu_custom_call.1} parent=32 // pred_region
          // Predicated region
          $region49: #{tpu_custom_call.1} parent=36 // pred_check
            _
          $region50: #{tpu_custom_call.1} parent=36 // pred_check_branch
            %481 = sbr.rel (0) target = $region52
          $region51: #{tpu_custom_call.1} parent=36 // pred_region
            loop: start=0, step=1, limit=1
            $region53: #{tpu_custom_call.1} parent=51 // loop_pre_header
              _
            $region54: #{tpu_custom_call.1} parent=51 // loop_header
              %s484 = sphi 0, %s488
              %p485 = scmp.ge.s32.totalorder %s484, 1
              %s489 = sphi [#allocation4], [#allocation4]
              %s490 = sphi %s6, %s6
            $region55: #{tpu_custom_call.1} parent=51 // loop_header_branch
              %487 = sbr.rel (%p485) target = $region59
            $region56: #{tpu_custom_call.1} parent=51 // loop_body
              %v491 = vld [vmem:[%s489] sm:$0xf]
              %492 = vst [vmem:[%s490] sm:$0xf] %v491
            $region57: #{tpu_custom_call.1} parent=51 // loop_footer
              %s488 = sadd.s32 1, %s484
            $region58: #{tpu_custom_call.1} parent=51 // loop_footer_branch
              %483 = sbr.rel target = $region54
            $region59: #{tpu_custom_call.1} parent=51 // loop_exit
              _
          $region52: #{tpu_custom_call.1} parent=36 // pred_fallthru
            _
        $region37: #{tpu_custom_call.1} parent=32 // pred_fallthru
          _
        // Predicated region
        $region38: #{tpu_custom_call.1} parent=32 // pred_check
          _
        $region39: #{tpu_custom_call.1} parent=32 // pred_check_branch
          %468 = sbr.rel (0) target = $region41
        $region40: #{tpu_custom_call.1} parent=32 // pred_region
          loop: start=0, step=1, limit=1
          $region42: #{tpu_custom_call.1} parent=40 // loop_pre_header
            _
          $region43: #{tpu_custom_call.1} parent=40 // loop_header
            %s471 = sphi 0, %s475
            %p472 = scmp.ge.s32.totalorder %s471, 1
            %s476 = sphi [#allocation4], [#allocation4]
            %s477 = sphi %s6, %s6
          $region44: #{tpu_custom_call.1} parent=40 // loop_header_branch
            %474 = sbr.rel (%p472) target = $region48
          $region45: #{tpu_custom_call.1} parent=40 // loop_body
            %v478 = vld [vmem:[%s476] sm:$0xf]
            %479 = vst [vmem:[%s477] sm:$0xf] %v478
          $region46: #{tpu_custom_call.1} parent=40 // loop_footer
            %s475 = sadd.s32 1, %s471
          $region47: #{tpu_custom_call.1} parent=40 // loop_footer_branch
            %470 = sbr.rel target = $region43
          $region48: #{tpu_custom_call.1} parent=40 // loop_exit
            _
        $region41: #{tpu_custom_call.1} parent=32 // pred_fallthru
          _
      $region33: #{tpu_custom_call.1} parent=28 // pred_fallthru
        _
      %493 = vnop
    $region29: #{tpu_custom_call.1} parent=1 // pred_fallthru
      _
    // Predicated region
    $region60: #{tpu_custom_call.1} parent=1 // pred_check
      _
    $region61: #{tpu_custom_call.1} parent=1 // pred_check_branch
      %495 = sbr.rel (0) target = $region63
    $region62: #{tpu_custom_call.1} parent=1 // pred_region
      %496 = dma.done [#allocation3], 64
    $region63: #{tpu_custom_call.1} parent=1 // pred_fallthru
      _
    // Predicated region
    $region64: #{tpu_custom_call.1} parent=1 // pred_check
      _
    $region65: #{tpu_custom_call.1} parent=1 // pred_check_branch
      %498 = sbr.rel (0) target = $region67
    $region66: #{tpu_custom_call.1} parent=1 // pred_region
      _
    $region67: #{tpu_custom_call.1} parent=1 // pred_fallthru
      _
    %499 = vsyncpa [#allocation3], 1

</llo_original>
